<compile_context>
chip_gen: v6e
topology: v6e:2x2x1
jax: 0.10.0
libtpu: 0.0.40
codegen_flags: <defaults>
</compile_context>

<pallas_src>
import functools

import jax
import jax.numpy as jnp
from jax.experimental import pallas as pl
from jax.experimental.pallas import tpu as pltpu


# ---------------------------------------------------------------------------
# Kernels
# ---------------------------------------------------------------------------

def _dense_relu_acc_kernel(x_ref, w_ref, b_ref, o_ref, acc_ref):
    """Multi-K-step path: f32 VMEM accumulator, init/finalize via pl.when."""
    k = pl.program_id(2)

    @pl.when(k == 0)
    def _():
        acc_ref[...] = jnp.zeros_like(acc_ref)

    # bf16 (or f32) operands, f32 accumulation on the MXU.
    acc_ref[...] += jnp.dot(x_ref[...], w_ref[...],
                            preferred_element_type=jnp.float32)

    @pl.when(k == pl.num_programs(2) - 1)
    def _():
        y = acc_ref[...] + b_ref[...]          # bias kept in f32
        o_ref[...] = jnp.maximum(y, 0.0).astype(o_ref.dtype)


def _dense_relu_single_kernel(x_ref, w_ref, b_ref, o_ref):
    """Single-K-step fast path: no accumulator round trip."""
    y = jnp.dot(x_ref[...], w_ref[...], preferred_element_type=jnp.float32)
    y = y + b_ref[...]
    o_ref[...] = jnp.maximum(y, 0.0).astype(o_ref.dtype)


# ---------------------------------------------------------------------------
# Helpers
# ---------------------------------------------------------------------------

def _round_up(x, m):
    return ((x + m - 1) // m) * m


def _pick_tile(dim, candidates):
    for c in candidates:
        if dim % c == 0:
            return c
    return dim


def _vmem_capacity_bytes():
    try:
        return int(pltpu.get_tpu_info().vmem_capacity_bytes)
    except Exception:
        return 64 << 20  # conservative default (v7x per-TensorCore VMEM)


def _select_tiles(Bp, Np, Kp, in_itemsize, out_itemsize, vmem_cap):
    """Pick (tm, tn, tk) >= 128, lane-aligned, under a per-generation budget."""
    tm = _pick_tile(Bp, (512, 256, 128))
    tn = _pick_tile(Np, (2048, 1024, 512, 256, 128))
    tk = _pick_tile(Kp, (2048, 1024, 512, 256, 128))

    def need(tm_, tn_, tk_):
        # 2x double-buffered inputs + 2x output + f32 acc + bias
        return (2 * (tm_ * tk_ + tk_ * tn_) * in_itemsize
                + 2 * tm_ * tn_ * out_itemsize
                + tm_ * tn_ * 4
                + 2 * tn_ * 4)

    budget = int(0.45 * vmem_cap)   # re-derived per chip (64 MiB v7x, 128 v5e/v6e)
    while need(tm, tn, tk) > budget:
        if tk >= tn and tk > 128:
            tk //= 2
        elif tn > 128:
            tn //= 2
        elif tk > 128:
            tk //= 2
        elif tm > 128:
            tm //= 2
        else:
            break

    # Megacore: keep >=2 blocks along a parallel axis when batch yields only 1.
    if Bp // tm == 1 and Np // tn == 1 and Np >= 256:
        best = None
        c = 128
        while c <= Np // 2:
            if Np % c == 0:
                best = c
            c += 128
        if best is not None:
            tn = best

    return tm, tn, tk, need(tm, tn, tk)


# ---------------------------------------------------------------------------
# Parameter prep (one-time; hoisted out of the per-call wrapper)
# ---------------------------------------------------------------------------

def prepare_params(w_t, bias, compute_dtype=jnp.bfloat16):
    """Pad/cast Linear params once to the kernel layout.

    w_t  : (F_in, F_out)  weight in (in, out) layout (== nn.Linear weight.T)
    bias : (F_out,)
    Returns (w_p, b_p, F_out): zero-padded to 128 multiples along K/N
    (zero padding is exact for matmul + relu), weight in the compute dtype,
    bias kept in f32 (added onto the f32 accumulator).
    """
    F_in, F_out = w_t.shape
    Kp = _round_up(F_in, 128)
    Np = _round_up(F_out, 128)
    w_p = jnp.pad(w_t, ((0, Kp - F_in), (0, Np - F_out))).astype(compute_dtype)
    b_p = jnp.pad(bias, (0, Np - F_out)).astype(jnp.float32).reshape(1, Np)
    return w_p, b_p, F_out


def init_params(key, input_size, dtype=jnp.bfloat16):
    """Matches nn.Linear(input_size, input_size) + xavier_uniform_(weight).

    Weight generated directly in the (F_in, F_out) layout the kernel consumes
    (xavier_uniform is symmetric for square fans), then padded & cast once.
    Pass dtype=jnp.float32 for strict torch `x.float()` parity.
    """
    kw, kb = jax.random.split(key)
    fan_in = fan_out = input_size
    a = (6.0 / (fan_in + fan_out)) ** 0.5                 # xavier uniform bound
    w_t = jax.random.uniform(kw, (input_size, input_size), jnp.float32, -a, a)
    bb = 1.0 / (fan_in ** 0.5)                            # nn.Linear bias init
    bias = jax.random.uniform(kb, (input_size,), jnp.float32, -bb, bb)
    return prepare_params(w_t, bias, dtype)


# ---------------------------------------------------------------------------
# Forward
# ---------------------------------------------------------------------------

def bottom_model_forward(x, w_p, b_p, *, out_features=None, out_dtype=None):
    """BottomModel forward: relu(x @ W^T + b) with pre-padded params.

    x   : (B, F_in)   any float dtype
    w_p : (Kp, Np)    weight in (in, out) layout, 128-padded (prepare_params)
    b_p : (1, Np)     f32 bias, 128-padded
    """
    B, F_in = x.shape
    Kp, Np = w_p.shape
    assert F_in <= Kp, "weight must be prepared for this input size"
    if out_features is None:
        out_features = Np
    compute_dtype = w_p.dtype
    if out_dtype is None:
        out_dtype = compute_dtype

    # Per-call activation padding only (weight/bias padding done at init).
    Bp = _round_up(B, 128)
    if (Bp, Kp) != (B, F_in):
        x = jnp.pad(x, ((0, Bp - B), (0, Kp - F_in)))
    x = x.astype(compute_dtype)

    vmem_cap = _vmem_capacity_bytes()
    in_sz = jnp.dtype(compute_dtype).itemsize
    out_sz = jnp.dtype(out_dtype).itemsize
    tm, tn, tk, vmem_needed = _select_tiles(Bp, Np, Kp, in_sz, out_sz, vmem_cap)

    grid_m, grid_n, grid_k = Bp // tm, Np // tn, Kp // tk
    vmem_limit = int(min(vmem_cap - (4 << 20),
                         max(vmem_needed + (8 << 20), 32 << 20)))

    cost = pl.CostEstimate(
        flops=2 * Bp * Kp * Np,
        transcendentals=0,
        bytes_accessed=(grid_n * Bp * Kp * in_sz       # x re-streamed per N tile
                        + grid_m * Kp * Np * in_sz     # w re-streamed per M tile
                        + grid_m * Np * 4              # bias
                        + Bp * Np * out_sz),           # output writeback
    )

    if grid_k == 1:
        # Single-K fast path: skip acc zero-init + read-modify-write entirely.
        out = pl.pallas_call(
            _dense_relu_single_kernel,
            out_shape=jax.ShapeDtypeStruct((Bp, Np), out_dtype),
            grid_spec=pltpu.PrefetchScalarGridSpec(
                num_scalar_prefetch=0,
                grid=(grid_m, grid_n),
                in_specs=[
                    pl.BlockSpec((tm, tk), lambda i, j: (i, 0)),   # x
                    pl.BlockSpec((tk, tn), lambda i, j: (0, j)),   # w
                    pl.BlockSpec((1, tn), lambda i, j: (0, j)),    # bias
                ],
                out_specs=pl.BlockSpec((tm, tn), lambda i, j: (i, j)),
            ),
            compiler_params=pltpu.CompilerParams(
                dimension_semantics=("parallel", "parallel"),
                vmem_limit_bytes=vmem_limit,
            ),
            cost_estimate=cost,
        )(x, w_p, b_p)
    else:
        out = pl.pallas_call(
            _dense_relu_acc_kernel,
            out_shape=jax.ShapeDtypeStruct((Bp, Np), out_dtype),
            grid_spec=pltpu.PrefetchScalarGridSpec(
                num_scalar_prefetch=0,
                grid=(grid_m, grid_n, grid_k),
                in_specs=[
                    pl.BlockSpec((tm, tk), lambda i, j, k: (i, k)),   # x
                    pl.BlockSpec((tk, tn), lambda i, j, k: (k, j)),   # w
                    pl.BlockSpec((1, tn), lambda i, j, k: (0, j)),    # bias
                ],
                out_specs=pl.BlockSpec((tm, tn), lambda i, j, k: (i, j)),
                scratch_shapes=[pltpu.VMEM((tm, tn), jnp.float32)],
            ),
            compiler_params=pltpu.CompilerParams(
                dimension_semantics=("parallel", "parallel", "arbitrary"),
                vmem_limit_bytes=vmem_limit,
            ),
            cost_estimate=cost,
        )(x, w_p, b_p)

    if (Bp, Np) != (B, out_features):
        out = out[:B, :out_features]
    return out


# ---------------------------------------------------------------------------
# Driver
# ---------------------------------------------------------------------------

if __name__ == "__main__":
    key = jax.random.PRNGKey(0)
    kx, kp = jax.random.split(key)

    batch, input_size = 8, 128
    x = jax.random.normal(kx, (batch, input_size), jnp.float32)
    w_p, b_p, f_out = init_params(kp, input_size)        # bf16 operands, f32 bias

    fwd = jax.jit(functools.partial(bottom_model_forward, out_features=f_out))
    out = jax.block_until_ready(fwd(x, w_p, b_p))
    assert out.shape == (batch, input_size)

    # Reference: relu(x @ W^T + b) with the same bf16-rounded operands, f32 math.
    w_ref = w_p[:input_size, :input_size].astype(jnp.float32)
    b_ref = b_p[0, :input_size]
    x_bf = x.astype(jnp.bfloat16).astype(jnp.float32)
    ref = jnp.maximum(x_bf @ w_ref + b_ref, 0.0)
    assert jnp.allclose(out.astype(jnp.float32), ref, atol=3e-2, rtol=3e-2)

    print("KERNEL_OK")
</pallas_src>

<mosaic_0001>
module attributes {stable_mosaic.version = 11 : i64} {
  func.func @_dense_relu_single_kernel(%arg0: i32, %arg1: i32, %arg2: memref<128x128xbf16, #tpu.memory_space<vmem>>, %arg3: memref<128x128xbf16, #tpu.memory_space<vmem>>, %arg4: memref<1x128xf32, #tpu.memory_space<vmem>>, %arg5: memref<128x128xbf16, #tpu.memory_space<vmem>>) attributes {dimension_semantics = [#tpu.dimension_semantics<parallel>, #tpu.dimension_semantics<parallel>], iteration_bounds = array<i64: 1, 1>, scalar_prefetch = 0 : i64, scratch_operands = 0 : i64, tpu.core_type = #tpu.core_type<tc>, window_params = [{transform_indices = @transform_0, window_bounds = array<i64: 128, 128>}, {transform_indices = @transform_1, window_bounds = array<i64: 128, 128>}, {transform_indices = @transform_2, window_bounds = array<i64: 1, 128>}, {transform_indices = @transform_3, window_bounds = array<i64: 128, 128>}]} {
    %c0 = arith.constant 0 : index
    %c0_0 = arith.constant 0 : index
    %0 = vector.load %arg2[%c0, %c0_0] : memref<128x128xbf16, #tpu.memory_space<vmem>>, vector<128x128xbf16>
    %c0_1 = arith.constant 0 : index
    %c0_2 = arith.constant 0 : index
    %1 = vector.load %arg3[%c0_1, %c0_2] : memref<128x128xbf16, #tpu.memory_space<vmem>>, vector<128x128xbf16>
    %cst = arith.constant dense<0.000000e+00> : vector<128x128xf32>
    %2 = tpu.matmul %0, %1, %cst {dimension_numbers = #tpu.dot_dimension_numbers<[1], [0], [0], [1], [0, 0, 1, 1], [], []>} : vector<128x128xbf16>, vector<128x128xbf16>, vector<128x128xf32> -> vector<128x128xf32>
    %c0_3 = arith.constant 0 : index
    %c0_4 = arith.constant 0 : index
    %3 = vector.load %arg4[%c0_3, %c0_4] : memref<1x128xf32, #tpu.memory_space<vmem>>, vector<1x128xf32>
    %4 = vector.broadcast %3 : vector<1x128xf32> to vector<128x128xf32>
    %5 = arith.addf %2, %4 : vector<128x128xf32>
    %cst_5 = arith.constant 0.000000e+00 : f32
    %6 = vector.broadcast %cst_5 : f32 to vector<128x128xf32>
    %7 = arith.maximumf %5, %6 : vector<128x128xf32>
    %8 = arith.truncf %7 : vector<128x128xf32> to vector<128x128xbf16>
    %c0_6 = arith.constant 0 : index
    %c0_7 = arith.constant 0 : index
    %9 = vector.load %arg5[%c0_6, %c0_7] : memref<128x128xbf16, #tpu.memory_space<vmem>>, vector<128x128xbf16>
    tpu.vector_store %arg5[%c0_6, %c0_7], %8 {strides = array<i32>} : memref<128x128xbf16, #tpu.memory_space<vmem>>, vector<128x128xbf16>,
    return
  }
  func.func @transform_0(%arg0: i32, %arg1: i32) -> (i32, i32) {
    %c0_i32 = arith.constant 0 : i32
    %c0_i32_0 = arith.constant 0 : i32
    return %arg0, %c0_i32 : i32, i32
  }
  func.func @transform_1(%arg0: i32, %arg1: i32) -> (i32, i32) {
    %c0_i32 = arith.constant 0 : i32
    %c0_i32_0 = arith.constant 0 : i32
    return %c0_i32, %arg1 : i32, i32
  }
  func.func @transform_2(%arg0: i32, %arg1: i32) -> (i32, i32) {
    %c0_i32 = arith.constant 0 : i32
    %c0_i32_0 = arith.constant 0 : i32
    return %c0_i32, %arg1 : i32, i32
  }
  func.func @transform_3(%arg0: i32, %arg1: i32) -> (i32, i32) {
    %c0_i32 = arith.constant 0 : i32
    return %arg0, %arg1 : i32, i32
  }
}

</mosaic_0001>

<llo_original>
// kernel: bottom_model_forward.1
$region0: #{bottom_model_forward.1}
  #allocation0 [shape = 'u32[]', space=smem, size = 0x4, offset = 0x4, fixed_abs, tag = 'smem constant byte address 0x4 - core index']
  #allocation1 [shape = 'u32[144,128]{1,0:T(1,128)}', space=vmem, size = 0x12000, scoped, tag = 'internal scratch']
  %s0 = inlined_call_operand.vmem [shape: bf16[128,128], index: 0, kind: input, shape index: {}]
  %s1 = inlined_call_operand.vmem [shape: bf16[128,128], index: 1, kind: input, shape index: {}]
  %s2 = inlined_call_operand.vmem [shape: f32[1,128], index: 2, kind: input, shape index: {}]
  %s3 = inlined_call_operand.vmem [shape: bf16[128,128], index: 3, kind: output, shape index: {}]
  %s4 = sld [smem:[#allocation0]]
  $region22: #{bottom_model_forward.1} parent=0
    _
  %s6 = ssub.s32 1, %s4
  %s7 = scalar_select 0, %s6, %s4
  // Predicated region
  $region2: #{bottom_model_forward.1} parent=0 // pred_check
    _
  $region3: #{bottom_model_forward.1} parent=0 // pred_check_branch
    %9 = sbr.rel (0) target = $region5
  $region4: #{bottom_model_forward.1} parent=0 // pred_region
    _
  $region5: #{bottom_model_forward.1} parent=0 // pred_fallthru
    _
  // Predicated region
  $region6: #{bottom_model_forward.1} parent=0 // pred_check
    _
  $region7: #{bottom_model_forward.1} parent=0 // pred_check_branch
    %11 = sbr.rel (0) target = $region9
  $region8: #{bottom_model_forward.1} parent=0 // pred_region
    _
  $region9: #{bottom_model_forward.1} parent=0 // pred_fallthru
    _
  // Predicated region
  $region10: #{bottom_model_forward.1} parent=0 // pred_check
    _
  $region11: #{bottom_model_forward.1} parent=0 // pred_check_branch
    %13 = sbr.rel (0) target = $region13
  $region12: #{bottom_model_forward.1} parent=0 // pred_region
    _
  $region13: #{bottom_model_forward.1} parent=0 // pred_fallthru
    _
  %v15 = vld [vmem:[%s0] sm:$0xf]
  %v16 = vld [vmem:[%s0 + $0x4] sm:$0xf]
  %v17 = vld [vmem:[%s0 + $0x8] sm:$0xf]
  %v18 = vld [vmem:[%s0 + $0xc] sm:$0xf]
  %v19 = vld [vmem:[%s0 + $0x10] sm:$0xf]
  %v20 = vld [vmem:[%s0 + $0x14] sm:$0xf]
  %v21 = vld [vmem:[%s0 + $0x18] sm:$0xf]
  %v22 = vld [vmem:[%s0 + $0x1c] sm:$0xf]
  %v23 = vld [vmem:[%s0 + $0x20] sm:$0xf]
  %v24 = vld [vmem:[%s0 + $0x24] sm:$0xf]
  %v25 = vld [vmem:[%s0 + $0x28] sm:$0xf]
  %v26 = vld [vmem:[%s0 + $0x2c] sm:$0xf]
  %v27 = vld [vmem:[%s0 + $0x30] sm:$0xf]
  %v28 = vld [vmem:[%s0 + $0x34] sm:$0xf]
  %v29 = vld [vmem:[%s0 + $0x38] sm:$0xf]
  %v30 = vld [vmem:[%s0 + $0x3c] sm:$0xf]
  %v31 = vld [vmem:[%s1] sm:$0xf]
  %v32 = vld [vmem:[%s1 + $0x4] sm:$0xf]
  %v33 = vld [vmem:[%s1 + $0x8] sm:$0xf]
  %v34 = vld [vmem:[%s1 + $0xc] sm:$0xf]
  %v35 = vld [vmem:[%s1 + $0x10] sm:$0xf]
  %v36 = vld [vmem:[%s1 + $0x14] sm:$0xf]
  %v37 = vld [vmem:[%s1 + $0x18] sm:$0xf]
  %v38 = vld [vmem:[%s1 + $0x1c] sm:$0xf]
  %v39 = vld [vmem:[%s1 + $0x20] sm:$0xf]
  %v40 = vld [vmem:[%s1 + $0x24] sm:$0xf]
  %v41 = vld [vmem:[%s1 + $0x28] sm:$0xf]
  %v42 = vld [vmem:[%s1 + $0x2c] sm:$0xf]
  %v43 = vld [vmem:[%s1 + $0x30] sm:$0xf]
  %v44 = vld [vmem:[%s1 + $0x34] sm:$0xf]
  %v45 = vld [vmem:[%s1 + $0x38] sm:$0xf]
  %v46 = vld [vmem:[%s1 + $0x3c] sm:$0xf]
  %v47 = vld [vmem:[%s2] sm:$0x1]
  %v49 = vlaneseq
  %v50 = vshrl.u32 %v49, 7
  %v51 = vsub.s32 0, %v50
  %v52 = vrot.slane %v47, %v51
  %v70 = vunpack.c.l.b16 %v15
  %v71 = vunpack.c.l.b16 %v16
  %v72 = vunpack.c.l.b16 %v17
  %v73 = vunpack.c.l.b16 %v18
  %v74 = vunpack.c.l.b16 %v19
  %v75 = vunpack.c.l.b16 %v20
  %v76 = vunpack.c.l.b16 %v21
  %v77 = vunpack.c.l.b16 %v22
  %v78 = vunpack.c.l.b16 %v23
  %v79 = vunpack.c.l.b16 %v24
  %v80 = vunpack.c.l.b16 %v25
  %v81 = vunpack.c.l.b16 %v26
  %v82 = vunpack.c.l.b16 %v27
  %v83 = vunpack.c.l.b16 %v28
  %v84 = vunpack.c.l.b16 %v29
  %v85 = vunpack.c.l.b16 %v30
  %v86 = vpack.c.b16 %v71, %v70
  %v87 = vpack.c.b16 %v73, %v72
  %v88 = vpack.c.b16 %v75, %v74
  %v89 = vpack.c.b16 %v77, %v76
  %v90 = vpack.c.b16 %v79, %v78
  %v91 = vpack.c.b16 %v81, %v80
  %v92 = vpack.c.b16 %v83, %v82
  %v93 = vpack.c.b16 %v85, %v84
  %v118 = vunpack.c.l.b16 %v31
  %v119 = vunpack.c.l.b16 %v32
  %v120 = vunpack.c.l.b16 %v33
  %v121 = vunpack.c.l.b16 %v34
  %v122 = vunpack.c.l.b16 %v35
  %v123 = vunpack.c.l.b16 %v36
  %v124 = vunpack.c.l.b16 %v37
  %v125 = vunpack.c.l.b16 %v38
  %v126 = vunpack.c.l.b16 %v39
  %v127 = vunpack.c.l.b16 %v40
  %v128 = vunpack.c.l.b16 %v41
  %v129 = vunpack.c.l.b16 %v42
  %v130 = vunpack.c.l.b16 %v43
  %v131 = vunpack.c.l.b16 %v44
  %v132 = vunpack.c.l.b16 %v45
  %v133 = vunpack.c.l.b16 %v46
  %v134 = vpack.c.b16 %v119, %v118
  %v135 = vpack.c.b16 %v121, %v120
  %v136 = vpack.c.b16 %v123, %v122
  %v137 = vpack.c.b16 %v125, %v124
  %v138 = vpack.c.b16 %v127, %v126
  %v139 = vpack.c.b16 %v129, %v128
  %v140 = vpack.c.b16 %v131, %v130
  %v141 = vpack.c.b16 %v133, %v132
  %150 = vmatprep.subr.bf16.mxu0 0
  %151 = vmatpush1.bf16.msra.mxu0 %v141
  %152 = vmatprep.subr.bf16.mxu0 0
  %153 = vmatpush1.bf16.msra.mxu0 %v140
  %154 = vmatprep.subr.bf16.mxu0 0
  %155 = vmatpush1.bf16.msra.mxu0 %v139
  %156 = vmatprep.subr.bf16.mxu0 0
  %157 = vmatpush1.bf16.msra.mxu0 %v138
  %158 = vmatprep.subr.bf16.mxu0 0
  %159 = vmatpush1.bf16.msra.mxu0 %v137
  %160 = vmatprep.subr.bf16.mxu0 0
  %161 = vmatpush1.bf16.msra.mxu0 %v136
  %162 = vmatprep.subr.bf16.mxu0 0
  %163 = vmatpush1.bf16.msra.mxu0 %v135
  %164 = vmatprep.subr.bf16.mxu0 0
  %165 = vmatpush1.bf16.msra.mxu0 %v134
  %166 = vmatprep.subr.bf16.mxu0 0
  %167 = vmatpush2.bf16.msra.mxu0 0
  %168 = vmatprep.subr.bf16.mxu0 0
  %169 = vmatpush2.bf16.msra.mxu0 0
  %170 = vmatprep.subr.bf16.mxu0 0
  %171 = vmatpush2.bf16.msra.mxu0 0
  %172 = vmatprep.subr.bf16.mxu0 0
  %173 = vmatpush2.bf16.msra.mxu0 0
  %174 = vmatprep.subr.bf16.mxu0 0
  %175 = vmatpush2.bf16.msra.mxu0 0
  %176 = vmatprep.subr.bf16.mxu0 0
  %177 = vmatpush2.bf16.msra.mxu0 0
  %178 = vmatprep.subr.bf16.mxu0 0
  %179 = vmatpush2.bf16.msra.mxu0 0
  %180 = vmatprep.subr.bf16.mxu0 0
  %181 = vmatpush2.bf16.msra.mxu0 0
  %182 = vmatprep.mubr.bf16.mxu0 0
  %183 = vmatmul.mubr.bf16.gmra.mxu0 %v86
  %v184 = vpop.f32.mrf.mxu0
  %v185 = vadd.f32 %v52, %v184
  %v186 = vpop.f32.mrf.mxu0
  %v187 = vpop.f32.mrf.mxu0
  %v188 = vadd.f32 %v52, %v187
  %v189 = vpop.f32.mrf.mxu0
  %190 = vmatprep.mubr.bf16.mxu0 0
  %191 = vmatmul.mubr.bf16.gmra.mxu0 %v87
  %v192 = vpop.f32.mrf.mxu0
  %v193 = vadd.f32 %v52, %v192
  %v194 = vpop.f32.mrf.mxu0
  %v195 = vpop.f32.mrf.mxu0
  %v196 = vadd.f32 %v52, %v195
  %v197 = vpop.f32.mrf.mxu0
  %198 = vmatprep.mubr.bf16.mxu0 0
  %199 = vmatmul.mubr.bf16.gmra.mxu0 %v88
  %v200 = vpop.f32.mrf.mxu0
  %v201 = vadd.f32 %v52, %v200
  %v202 = vpop.f32.mrf.mxu0
  %v203 = vpop.f32.mrf.mxu0
  %v204 = vadd.f32 %v52, %v203
  %v205 = vpop.f32.mrf.mxu0
  %206 = vmatprep.mubr.bf16.mxu0 0
  %207 = vmatmul.mubr.bf16.gmra.mxu0 %v89
  %v208 = vpop.f32.mrf.mxu0
  %v209 = vadd.f32 %v52, %v208
  %v210 = vpop.f32.mrf.mxu0
  %v211 = vpop.f32.mrf.mxu0
  %v212 = vadd.f32 %v52, %v211
  %v213 = vpop.f32.mrf.mxu0
  %214 = vmatprep.mubr.bf16.mxu0 0
  %215 = vmatmul.mubr.bf16.gmra.mxu0 %v90
  %v216 = vpop.f32.mrf.mxu0
  %v217 = vadd.f32 %v52, %v216
  %v218 = vpop.f32.mrf.mxu0
  %v219 = vpop.f32.mrf.mxu0
  %v220 = vadd.f32 %v52, %v219
  %v221 = vpop.f32.mrf.mxu0
  %222 = vmatprep.mubr.bf16.mxu0 0
  %223 = vmatmul.mubr.bf16.gmra.mxu0 %v91
  %v224 = vpop.f32.mrf.mxu0
  %v225 = vadd.f32 %v52, %v224
  %v226 = vpop.f32.mrf.mxu0
  %v227 = vpop.f32.mrf.mxu0
  %v228 = vadd.f32 %v52, %v227
  %v229 = vpop.f32.mrf.mxu0
  %230 = vmatprep.mubr.bf16.mxu0 0
  %231 = vmatmul.mubr.bf16.gmra.mxu0 %v92
  %v232 = vpop.f32.mrf.mxu0
  %v233 = vadd.f32 %v52, %v232
  %v234 = vpop.f32.mrf.mxu0
  %v235 = vpop.f32.mrf.mxu0
  %v236 = vadd.f32 %v52, %v235
  %v237 = vpop.f32.mrf.mxu0
  %238 = vmatprep.mubr.bf16.mxu0 0
  %239 = vmatmul.mubr.bf16.gmra.mxu0 %v93
  %v240 = vpop.f32.mrf.mxu0
  %v241 = vadd.f32 %v52, %v240
  %v242 = vpop.f32.mrf.mxu0
  %v243 = vpop.f32.mrf.mxu0
  %v244 = vadd.f32 %v52, %v243
  %v245 = vpop.f32.mrf.mxu0
  %246 = vdwg.mxu0
  %v247 = vmax.f32 %v185, 0.0
  %v248 = vmax.f32 %v188, 0.0
  %v249 = vmax.f32 %v193, 0.0
  %v250 = vmax.f32 %v196, 0.0
  %v251 = vmax.f32 %v201, 0.0
  %v252 = vmax.f32 %v204, 0.0
  %v253 = vmax.f32 %v209, 0.0
  %v254 = vmax.f32 %v212, 0.0
  %v255 = vmax.f32 %v217, 0.0
  %v256 = vmax.f32 %v220, 0.0
  %v257 = vmax.f32 %v225, 0.0
  %v258 = vmax.f32 %v228, 0.0
  %v259 = vmax.f32 %v233, 0.0
  %v260 = vmax.f32 %v236, 0.0
  %v261 = vmax.f32 %v241, 0.0
  %v262 = vmax.f32 %v244, 0.0
  %v263 = vpack.c.bf16 %v248, %v247
  %v264 = vpack.c.bf16 %v250, %v249
  %v265 = vpack.c.bf16 %v252, %v251
  %v266 = vpack.c.bf16 %v254, %v253
  %v267 = vpack.c.bf16 %v256, %v255
  %v268 = vpack.c.bf16 %v258, %v257
  %v269 = vpack.c.bf16 %v260, %v259
  %v270 = vpack.c.bf16 %v262, %v261
  %v279 = vunpack.c.l.b16 %v263
  %v280 = vunpack.c.h.b16 %v263
  %v281 = vunpack.c.l.b16 %v264
  %v282 = vunpack.c.h.b16 %v264
  %v283 = vunpack.c.l.b16 %v265
  %v284 = vunpack.c.h.b16 %v265
  %v285 = vunpack.c.l.b16 %v266
  %v286 = vunpack.c.h.b16 %v266
  %v287 = vunpack.c.l.b16 %v267
  %v288 = vunpack.c.h.b16 %v267
  %v289 = vunpack.c.l.b16 %v268
  %v290 = vunpack.c.h.b16 %v268
  %v291 = vunpack.c.l.b16 %v269
  %v292 = vunpack.c.h.b16 %v269
  %v293 = vunpack.c.l.b16 %v270
  %v294 = vunpack.c.h.b16 %v270
  %v295 = vpack.c.b16 %v279, %v279
  %v296 = vpack.c.b16 %v280, %v280
  %v297 = vpack.c.b16 %v281, %v281
  %v298 = vpack.c.b16 %v282, %v282
  %v299 = vpack.c.b16 %v283, %v283
  %v300 = vpack.c.b16 %v284, %v284
  %v301 = vpack.c.b16 %v285, %v285
  %v302 = vpack.c.b16 %v286, %v286
  %v303 = vpack.c.b16 %v287, %v287
  %v304 = vpack.c.b16 %v288, %v288
  %v305 = vpack.c.b16 %v289, %v289
  %v306 = vpack.c.b16 %v290, %v290
  %v307 = vpack.c.b16 %v291, %v291
  %v308 = vpack.c.b16 %v292, %v292
  %v309 = vpack.c.b16 %v293, %v293
  %v310 = vpack.c.b16 %v294, %v294
  %327 = vst [vmem:[%s3] sm:$0xf] %v295
  %328 = vst [vmem:[%s3 + $0x4] sm:$0xf] %v296
  %329 = vst [vmem:[%s3 + $0x8] sm:$0xf] %v297
  %330 = vst [vmem:[%s3 + $0xc] sm:$0xf] %v298
  %331 = vst [vmem:[%s3 + $0x10] sm:$0xf] %v299
  %332 = vst [vmem:[%s3 + $0x14] sm:$0xf] %v300
  %333 = vst [vmem:[%s3 + $0x18] sm:$0xf] %v301
  %334 = vst [vmem:[%s3 + $0x1c] sm:$0xf] %v302
  %335 = vst [vmem:[%s3 + $0x20] sm:$0xf] %v303
  %336 = vst [vmem:[%s3 + $0x24] sm:$0xf] %v304
  %337 = vst [vmem:[%s3 + $0x28] sm:$0xf] %v305
  %338 = vst [vmem:[%s3 + $0x2c] sm:$0xf] %v306
  %339 = vst [vmem:[%s3 + $0x30] sm:$0xf] %v307
  %340 = vst [vmem:[%s3 + $0x34] sm:$0xf] %v308
  %341 = vst [vmem:[%s3 + $0x38] sm:$0xf] %v309
  %342 = vst [vmem:[%s3 + $0x3c] sm:$0xf] %v310
  // Predicated region
  $region14: #{bottom_model_forward.1} parent=0 // pred_check
    _
  $region15: #{bottom_model_forward.1} parent=0 // pred_check_branch
    %344 = sbr.rel (0) target = $region17
  $region16: #{bottom_model_forward.1} parent=0 // pred_region
    _
  $region17: #{bottom_model_forward.1} parent=0 // pred_fallthru
    _
  // Predicated region
  $region18: #{bottom_model_forward.1} parent=0 // pred_check
    _
  $region19: #{bottom_model_forward.1} parent=0 // pred_check_branch
    %346 = sbr.rel (0) target = $region21
  $region20: #{bottom_model_forward.1} parent=0 // pred_region
    _
  $region21: #{bottom_model_forward.1} parent=0 // pred_fallthru
    _

</llo_original>
